<compile_context>
chip_gen: v5e
topology: v5e:2x2
jax: 0.10.0
libtpu: 0.0.40
codegen_flags: <defaults>
</compile_context>

<pallas_src>
import jax
import jax.numpy as jnp
from jax.experimental import pallas as pl
from jax.experimental.pallas import tpu as pltpu

# Problem/layout constants (mnist -> mnistm branch of the module).
D_IN = 3 * 28 * 28          # 2352 — kept unpadded (full-dim block, lane rule ok)
H = 100
H_PAD = 128                 # lane-aligned hidden dim
N_OUT = 2
MAX_TB = 1024               # batch tile (rows): 2 x ~9.6 MB f32 x-buffers
VMEM_LIMIT_BYTES = 48 * 1024 * 1024   # > v5e 16 MiB default; < v7x 64 MiB phys


def _cdiv(a, b):
    return (a + b - 1) // b


def _round_up(n, m):
    return ((n + m - 1) // m) * m


def _discriminator_kernel(x_ref, w1_ref, b1_ref, w2_ref, b2_ref, out_ref):
    # In-kernel bf16 cast of the x tile (VPU, hidden under the x DMA), then
    # the dominant (tb, 2352) @ (2352, 128) MXU matmul with f32 accumulation.
    x = x_ref[...].astype(jnp.bfloat16)
    h = jnp.dot(x, w1_ref[...], preferred_element_type=jnp.float32)
    h = jnp.maximum(h + b1_ref[...], 0.0)

    # Second linear: tiny (128 -> 2); fully f32 (negligible cost, tight logits).
    logits = jnp.dot(h, w2_ref[...],
                     preferred_element_type=jnp.float32) + b2_ref[...]

    # Numerically stable softmax over the class axis (width 2), f32.
    # approx reciprocal runs on the EUP slot (free under the DMA).
    m = jnp.max(logits, axis=-1, keepdims=True)
    e = jnp.exp(logits - m)
    probs = e * pl.reciprocal(jnp.sum(e, axis=-1, keepdims=True), approx=True)

    # Single merged output buffer: [:, 0:2] = logits, [:, 2:4] = probs.
    out_ref[:, 0:N_OUT] = logits.astype(out_ref.dtype)
    out_ref[:, N_OUT:2 * N_OUT] = probs.astype(out_ref.dtype)


def prepare_params(params):
    """One-time prep: pad the hidden dim 100 -> 128 and cast w1 to bf16.

    Raw params are stored transposed w.r.t. torch ((in, out) instead of
    (out, in)) so the kernel computes row-major (B, D) @ (D, H) matmuls.
    The feature dim (2352) is intentionally left unpadded.
    """
    w1, b1, w2, b2 = params["w1"], params["b1"], params["w2"], params["b2"]
    d, h = w1.shape
    o = w2.shape[1]
    w1p = (jnp.zeros((d, H_PAD), jnp.float32)
           .at[:, :h].set(w1.astype(jnp.float32))
           .astype(jnp.bfloat16))
    b1p = jnp.zeros((1, H_PAD), jnp.float32).at[:, :h].set(
        b1.astype(jnp.float32))
    w2p = jnp.zeros((H_PAD, o), jnp.float32).at[:h, :].set(
        w2.astype(jnp.float32))
    b2p = b2.astype(jnp.float32)
    return {"w1": w1p, "b1": b1p, "w2": w2p, "b2": b2p}


def discriminator_forward(input_feature, alpha, prep):
    """Forward pass of Discriminator (mnist -> mnistm branch).

    input_feature: (B, 3, 28, 28) float32, NCHW like PyTorch.
    alpha: scalar — only affects ReverseLayerF's backward; forward is identity.
    prep: output of prepare_params() (hidden-padded / bf16 weights).
    Returns: (softmax_probs (B, 2), logits (B, 2))
    """
    del alpha  # ReverseLayerF forward is identity; alpha only scales grads.
    # TODO(synk): gradient reversal (backward, scaled by -alpha) would need a
    # jax.custom_vjp wrapper; only the forward pass is implemented here.

    B = input_feature.shape[0]
    x = input_feature.reshape(B, D_IN)   # free view; stays f32, no pad/cast

    # Batch tiling. Round the tile to 16 rows (bf16 sublane tile) and split
    # the batch as evenly as possible instead of padding up to a full MAX_TB
    # tile. Force >= 2 grid steps when there is enough work so the
    # ("parallel",) grid axis is sharded across v7x's two TensorCores.
    b16 = _round_up(max(B, 1), 16)
    min_blocks = 2 if b16 >= 32 else 1
    num_blocks = max(min_blocks, _cdiv(b16, MAX_TB))
    tb = _round_up(_cdiv(b16, num_blocks), 16)
    b_pad = num_blocks * tb

    # Batch-only zero pad, materialized only when needed (no-op for batch
    # sizes already divisible by the tile; the padded rows are inert and
    # sliced off at the end).
    if b_pad != B:
        x = jnp.pad(x, ((0, b_pad - B), (0, 0)))

    bytes_accessed = (b_pad * D_IN * 4           # x (f32, single HBM pass)
                      + D_IN * H_PAD * 2         # w1 (bf16, resident)
                      + H_PAD * 4                # b1
                      + H_PAD * N_OUT * 4        # w2
                      + N_OUT * 4                # b2
                      + b_pad * 2 * N_OUT * 4)   # merged output

    out = pl.pallas_call(
        _discriminator_kernel,
        grid=(num_blocks,),
        in_specs=[
            # x: moves with the grid; full feature dim so the 128-lane
            # divisibility rule is satisfied without padding.
            pl.BlockSpec((tb, D_IN), lambda i: (i, 0)),
            pl.BlockSpec((D_IN, H_PAD), lambda i: (0, 0)),     # w1: resident
            pl.BlockSpec((1, H_PAD), lambda i: (0, 0)),        # b1: resident
            pl.BlockSpec((H_PAD, N_OUT), lambda i: (0, 0)),    # w2: resident
            pl.BlockSpec((1, N_OUT), lambda i: (0, 0)),        # b2: resident
        ],
        out_specs=pl.BlockSpec((tb, 2 * N_OUT), lambda i: (i, 0)),
        out_shape=jax.ShapeDtypeStruct((b_pad, 2 * N_OUT), jnp.float32),
        compiler_params=pltpu.CompilerParams(
            dimension_semantics=("parallel",),
            vmem_limit_bytes=VMEM_LIMIT_BYTES),
        cost_estimate=pl.CostEstimate(
            flops=2 * b_pad * D_IN * H_PAD + 2 * b_pad * H_PAD * N_OUT,
            transcendentals=b_pad * N_OUT,
            bytes_accessed=bytes_accessed,
        ),
    )(x, prep["w1"], prep["b1"], prep["w2"], prep["b2"])

    logits = out[:B, :N_OUT]
    probs = out[:B, N_OUT:2 * N_OUT]
    return probs, logits


def init_params(key, in_features=D_IN, hidden=H, out_features=N_OUT):
    """Deterministic init mimicking torch.nn.Linear default
    (U[-1/sqrt(fan_in), 1/sqrt(fan_in)]). Weights stored as (in, out)."""
    k1, k2, k3, k4 = jax.random.split(key, 4)
    bound1 = 1.0 / jnp.sqrt(jnp.float32(in_features))
    bound2 = 1.0 / jnp.sqrt(jnp.float32(hidden))
    return {
        "w1": jax.random.uniform(k1, (in_features, hidden), jnp.float32,
                                 -bound1, bound1),
        "b1": jax.random.uniform(k2, (1, hidden), jnp.float32, -bound1, bound1),
        "w2": jax.random.uniform(k3, (hidden, out_features), jnp.float32,
                                 -bound2, bound2),
        "b2": jax.random.uniform(k4, (1, out_features), jnp.float32,
                                 -bound2, bound2),
    }


if __name__ == "__main__":
    key = jax.random.PRNGKey(0)
    k_in, k_params = jax.random.split(key)

    # Batch of 2 "mnistm-like" images: NCHW (2, 3, 28, 28)
    input_feature = jax.random.normal(k_in, (2, 3, 28, 28), dtype=jnp.float32)
    alpha = jnp.float32(0.5)

    raw_params = init_params(k_params)
    prep_params = prepare_params(raw_params)   # one-time pad/cast

    probs, logits = discriminator_forward(input_feature, alpha, prep_params)
    jax.block_until_ready((probs, logits))

    # Sanity check against a plain-JAX f32 reference (kernel uses bf16 for the
    # big matmul, so tolerances are loosened accordingly).
    x_flat = input_feature.reshape(2, -1)
    h_ref = jnp.maximum(x_flat @ raw_params["w1"] + raw_params["b1"], 0.0)
    logits_ref = h_ref @ raw_params["w2"] + raw_params["b2"]
    probs_ref = jax.nn.softmax(logits_ref, axis=1)

    assert logits.shape == (2, 2) and probs.shape == (2, 2)
    assert jnp.allclose(logits, logits_ref, atol=2e-2, rtol=2e-2), (
        logits, logits_ref)
    assert jnp.allclose(probs, probs_ref, atol=1e-2, rtol=1e-2), (
        probs, probs_ref)

    print("KERNEL_OK")
</pallas_src>

<mosaic_0001>
module attributes {stable_mosaic.version = 11 : i64} {
  func.func @_discriminator_kernel(%arg0: i32, %arg1: memref<16x2352xf32, #tpu.memory_space<vmem>>, %arg2: memref<2352x128xbf16, #tpu.memory_space<vmem>>, %arg3: memref<1x128xf32, #tpu.memory_space<vmem>>, %arg4: memref<128x2xf32, #tpu.memory_space<vmem>>, %arg5: memref<1x2xf32, #tpu.memory_space<vmem>>, %arg6: memref<16x4xf32, #tpu.memory_space<vmem>>) attributes {dimension_semantics = [#tpu.dimension_semantics<parallel>], iteration_bounds = array<i64: 1>, scalar_prefetch = 0 : i64, scratch_operands = 0 : i64, tpu.core_type = #tpu.core_type<tc>, window_params = [{transform_indices = @transform_0, window_bounds = array<i64: 16, 2352>}, {pipeline_mode = #tpu.pipeline_mode<synchronous>, transform_indices = @transform_1, window_bounds = array<i64: 2352, 128>}, {pipeline_mode = #tpu.pipeline_mode<synchronous>, transform_indices = @transform_2, window_bounds = array<i64: 1, 128>}, {pipeline_mode = #tpu.pipeline_mode<synchronous>, transform_indices = @transform_3, window_bounds = array<i64: 128, 2>}, {pipeline_mode = #tpu.pipeline_mode<synchronous>, transform_indices = @transform_4, window_bounds = array<i64: 1, 2>}, {transform_indices = @transform_5, window_bounds = array<i64: 16, 4>}]} {
    %c0 = arith.constant 0 : index
    %c0_0 = arith.constant 0 : index
    %0 = vector.load %arg1[%c0, %c0_0] : memref<16x2352xf32, #tpu.memory_space<vmem>>, vector<16x2352xf32>
    %1 = arith.truncf %0 : vector<16x2352xf32> to vector<16x2352xbf16>
    %c0_1 = arith.constant 0 : index
    %c0_2 = arith.constant 0 : index
    %2 = vector.load %arg2[%c0_1, %c0_2] : memref<2352x128xbf16, #tpu.memory_space<vmem>>, vector<2352x128xbf16>
    %cst = arith.constant dense<0.000000e+00> : vector<16x128xf32>
    %3 = tpu.matmul %1, %2, %cst {dimension_numbers = #tpu.dot_dimension_numbers<[1], [0], [0], [1], [0, 0, 1, 1], [], []>} : vector<16x2352xbf16>, vector<2352x128xbf16>, vector<16x128xf32> -> vector<16x128xf32>
    %c0_3 = arith.constant 0 : index
    %c0_4 = arith.constant 0 : index
    %4 = vector.load %arg3[%c0_3, %c0_4] : memref<1x128xf32, #tpu.memory_space<vmem>>, vector<1x128xf32>
    %5 = vector.broadcast %4 : vector<1x128xf32> to vector<16x128xf32>
    %6 = arith.addf %3, %5 : vector<16x128xf32>
    %cst_5 = arith.constant 0.000000e+00 : f32
    %7 = vector.broadcast %cst_5 : f32 to vector<16x128xf32>
    %8 = arith.maximumf %6, %7 : vector<16x128xf32>
    %c0_6 = arith.constant 0 : index
    %c0_7 = arith.constant 0 : index
    %9 = vector.load %arg4[%c0_6, %c0_7] : memref<128x2xf32, #tpu.memory_space<vmem>>, vector<128x2xf32>
    %cst_8 = arith.constant dense<0.000000e+00> : vector<16x2xf32>
    %10 = tpu.matmul %8, %9, %cst_8 {dimension_numbers = #tpu.dot_dimension_numbers<[1], [0], [0], [1], [0, 0, 1, 1], [], []>} : vector<16x128xf32>, vector<128x2xf32>, vector<16x2xf32> -> vector<16x2xf32>
    %c0_9 = arith.constant 0 : index
    %c0_10 = arith.constant 0 : index
    %11 = vector.load %arg5[%c0_9, %c0_10] : memref<1x2xf32, #tpu.memory_space<vmem>>, vector<1x2xf32>
    %12 = vector.broadcast %11 : vector<1x2xf32> to vector<16x2xf32>
    %13 = arith.addf %10, %12 : vector<16x2xf32>
    %cst_11 = arith.constant dense<0xFF800000> : vector<16xf32>
    %14 = vector.multi_reduction <maximumf>, %13, %cst_11 [1] : vector<16x2xf32> to vector<16xf32>
    %15 = vector.shape_cast %14 : vector<16xf32> to vector<16x1xf32>
    %16 = vector.broadcast %15 : vector<16x1xf32> to vector<16x2xf32>
    %17 = arith.subf %13, %16 : vector<16x2xf32>
    %18 = math.exp %17 : vector<16x2xf32>
    %cst_12 = arith.constant dense<0.000000e+00> : vector<16xf32>
    %19 = vector.multi_reduction <add>, %18, %cst_12 [1] : vector<16x2xf32> to vector<16xf32>
    %20 = vector.shape_cast %19 : vector<16xf32> to vector<16x1xf32>
    %21 = tpu.reciprocal %20 {approx = true} : vector<16x1xf32> -> vector<16x1xf32>
    %22 = vector.broadcast %21 : vector<16x1xf32> to vector<16x2xf32>
    %23 = arith.mulf %18, %22 : vector<16x2xf32>
    %c0_13 = arith.constant 0 : index
    %c0_14 = arith.constant 0 : index
    %24 = vector.load %arg6[%c0_13, %c0_14] : memref<16x4xf32, #tpu.memory_space<vmem>>, vector<16x2xf32>
    tpu.vector_store %arg6[%c0_13, %c0_14], %13 {strides = array<i32>} : memref<16x4xf32, #tpu.memory_space<vmem>>, vector<16x2xf32>,
    %c0_15 = arith.constant 0 : index
    %c2 = arith.constant 2 : index
    %25 = vector.load %arg6[%c0_15, %c2] : memref<16x4xf32, #tpu.memory_space<vmem>>, vector<16x2xf32>
    tpu.vector_store %arg6[%c0_15, %c2], %23 {strides = array<i32>} : memref<16x4xf32, #tpu.memory_space<vmem>>, vector<16x2xf32>,
    return
  }
  func.func @transform_0(%arg0: i32) -> (i32, i32) {
    %c0_i32 = arith.constant 0 : i32
    %c0_i32_0 = arith.constant 0 : i32
    return %arg0, %c0_i32 : i32, i32
  }
  func.func @transform_1(%arg0: i32) -> (i32, i32) {
    %c0_i32 = arith.constant 0 : i32
    %c0_i32_0 = arith.constant 0 : i32
    %c0_i32_1 = arith.constant 0 : i32
    return %c0_i32, %c0_i32_0 : i32, i32
  }
  func.func @transform_2(%arg0: i32) -> (i32, i32) {
    %c0_i32 = arith.constant 0 : i32
    %c0_i32_0 = arith.constant 0 : i32
    %c0_i32_1 = arith.constant 0 : i32
    return %c0_i32, %c0_i32_0 : i32, i32
  }
  func.func @transform_3(%arg0: i32) -> (i32, i32) {
    %c0_i32 = arith.constant 0 : i32
    %c0_i32_0 = arith.constant 0 : i32
    %c0_i32_1 = arith.constant 0 : i32
    return %c0_i32, %c0_i32_0 : i32, i32
  }
  func.func @transform_4(%arg0: i32) -> (i32, i32) {
    %c0_i32 = arith.constant 0 : i32
    %c0_i32_0 = arith.constant 0 : i32
    %c0_i32_1 = arith.constant 0 : i32
    return %c0_i32, %c0_i32_0 : i32, i32
  }
  func.func @transform_5(%arg0: i32) -> (i32, i32) {
    %c0_i32 = arith.constant 0 : i32
    %c0_i32_0 = arith.constant 0 : i32
    return %arg0, %c0_i32 : i32, i32
  }
}

</mosaic_0001>

<llo_original>
// kernel: tpu_custom_call.1
$region0: #{tpu_custom_call.1}
  #allocation0 [shape = 'u32[]', space=smem, size = 0x4, offset = 0x4, fixed_abs, tag = 'smem constant byte address 0x4 - core index']
  #allocation1 [shape = 'u32[72,128]{1,0:T(1,128)}', space=vmem, size = 0x9000, scoped, tag = 'internal scratch']
  %s0 = inlined_call_operand.hbm [shape: f32[16,2352], index: 0, kind: input, shape index: {}]
  %s1 = inlined_call_operand.hbm [shape: bf16[2352,128], index: 1, kind: input, shape index: {}]
  %s2 = inlined_call_operand.vmem [shape: f32[1,128], index: 2, kind: input, shape index: {}]
  %s3 = inlined_call_operand.vmem [shape: f32[128,2], index: 3, kind: input, shape index: {}]
  %s4 = inlined_call_operand.vmem [shape: f32[1,2], index: 4, kind: input, shape index: {}]
  %s5 = inlined_call_operand.vmem [shape: f32[16,4], index: 5, kind: output, shape index: {}]
  %s6 = sld [smem:[#allocation0]]
  $region38: #{tpu_custom_call.1} parent=0
    _
  %s8 = ssub.s32 1, %s6
  %s9 = scalar_select 0, %s8, %s6
  $region1: #{tpu_custom_call.1} parent=0
    #allocation2 [shape = 'u8[155648]{0}', space=vmem, size = 0x26000, scoped, tag = 'input window, operand 0, single buffered']
    #allocation3 [shape = 's32[1]{0}', space=sflag, size = 0x4, scoped, tag = 'scoped memory for tpu_custom_call.1']
    #allocation4 [shape = 'u8[602112]{0}', space=vmem, size = 0x93000, scoped, tag = 'input window, operand 1, single buffered']
    #allocation5 [shape = 's32[1]{0}', space=sflag, size = 0x4, scoped, tag = 'scoped memory for tpu_custom_call.1']
    %10 = vsyncpa [#allocation3], 0
    %11 = vsyncpa [#allocation5], 0
    // Predicated region
    $region2: #{tpu_custom_call.1} parent=1 // pred_check
      _
    $region3: #{tpu_custom_call.1} parent=1 // pred_check_branch
      %13 = sbr.rel (0) target = $region5
    $region4: #{tpu_custom_call.1} parent=1 // pred_region
      %15 = vsyncadd [#allocation3], 0
      %s16 = sshll.u32 %s0, 4
      %s17 = int_to_ptr.hbm [resolvable:$true] %s16
      %s18 = sshll.u32 [#allocation2], 4
      %s19 = int_to_ptr.vmem [resolvable:$true] %s18
      %24 = dma.hbm_to_vmem [thread:$0]  %s17, 4864, %s19, [#allocation3], 2432, 2432, 152
    $region5: #{tpu_custom_call.1} parent=1 // pred_fallthru
      _
    // Predicated region
    $region6: #{tpu_custom_call.1} parent=1 // pred_check
      _
    $region7: #{tpu_custom_call.1} parent=1 // pred_check_branch
      %26 = sbr.rel (0) target = $region9
    $region8: #{tpu_custom_call.1} parent=1 // pred_region
      %28 = vsyncadd [#allocation5], 0
      %s29 = sshll.u32 %s1, 4
      %s30 = int_to_ptr.hbm [resolvable:$true] %s29
      %s31 = sshll.u32 [#allocation4], 4
      %s32 = int_to_ptr.vmem [resolvable:$true] %s31
      %37 = dma.hbm_to_vmem [thread:$0]  %s30, 18816, %s32, [#allocation5], 64, 64, 4
    $region9: #{tpu_custom_call.1} parent=1 // pred_fallthru
      _
    // Predicated region
    $region10: #{tpu_custom_call.1} parent=1 // pred_check
      _
    $region11: #{tpu_custom_call.1} parent=1 // pred_check_branch
      %39 = sbr.rel (0) target = $region13
    $region12: #{tpu_custom_call.1} parent=1 // pred_region
      _
    $region13: #{tpu_custom_call.1} parent=1 // pred_fallthru
      _
    // Predicated region
    $region14: #{tpu_custom_call.1} parent=1 // pred_check
      _
    $region15: #{tpu_custom_call.1} parent=1 // pred_check_branch
      %41 = sbr.rel (0) target = $region17
    $region16: #{tpu_custom_call.1} parent=1 // pred_region
      _
    $region17: #{tpu_custom_call.1} parent=1 // pred_fallthru
      _
    // Predicated region
    $region18: #{tpu_custom_call.1} parent=1 // pred_check
      _
    $region19: #{tpu_custom_call.1} parent=1 // pred_check_branch
      %43 = sbr.rel (0) target = $region21
    $region20: #{tpu_custom_call.1} parent=1 // pred_region
      _
    $region21: #{tpu_custom_call.1} parent=1 // pred_fallthru
      _
    // Predicated region
    $region22: #{tpu_custom_call.1} parent=1 // pred_check
      _
    $region23: #{tpu_custom_call.1} parent=1 // pred_check_branch
      %45 = sbr.rel (0) target = $region25
    $region24: #{tpu_custom_call.1} parent=1 // pred_region
      %47 = dma.done [#allocation3], 4864
    $region25: #{tpu_custom_call.1} parent=1 // pred_fallthru
      _
    // Predicated region
    $region26: #{tpu_custom_call.1} parent=1 // pred_check
      _
    $region27: #{tpu_custom_call.1} parent=1 // pred_check_branch
      %49 = sbr.rel (0) target = $region29
    $region28: #{tpu_custom_call.1} parent=1 // pred_region
      %51 = dma.done [#allocation5], 18816
    $region29: #{tpu_custom_call.1} parent=1 // pred_fallthru
      _
    %v53 = vld [vmem:[#allocation2] sm:$0xff]
    %v54 = vld [vmem:[#allocation2 + $0x8] sm:$0xff]
    %v55 = vld [vmem:[#allocation2 + $0x10] sm:$0xff]
    %v56 = vld [vmem:[#allocation2 + $0x18] sm:$0xff]
    %v57 = vld [vmem:[#allocation2 + $0x20] sm:$0xff]
    %v58 = vld [vmem:[#allocation2 + $0x28] sm:$0xff]
    %v59 = vld [vmem:[#allocation2 + $0x30] sm:$0xff]
    %v60 = vld [vmem:[#allocation2 + $0x38] sm:$0xff]
    %v61 = vld [vmem:[#allocation2 + $0x40] sm:$0xff]
    %v62 = vld [vmem:[#allocation2 + $0x48] sm:$0xff]
    %v63 = vld [vmem:[#allocation2 + $0x50] sm:$0xff]
    %v64 = vld [vmem:[#allocation2 + $0x58] sm:$0xff]
    %v65 = vld [vmem:[#allocation2 + $0x60] sm:$0xff]
    %v66 = vld [vmem:[#allocation2 + $0x68] sm:$0xff]
    %v67 = vld [vmem:[#allocation2 + $0x70] sm:$0xff]
    %v68 = vld [vmem:[#allocation2 + $0x78] sm:$0xff]
    %v69 = vld [vmem:[#allocation2 + $0x80] sm:$0xff]
    %v70 = vld [vmem:[#allocation2 + $0x88] sm:$0xff]
    %v71 = vld [vmem:[#allocation2 + $0x90] sm:$0xff]
    %v72 = vld [vmem:[#allocation2 + $0x98] sm:$0xff]
    %v73 = vld [vmem:[#allocation2 + $0xa0] sm:$0xff]
    %v74 = vld [vmem:[#allocation2 + $0xa8] sm:$0xff]
    %v75 = vld [vmem:[#allocation2 + $0xb0] sm:$0xff]
    %v76 = vld [vmem:[#allocation2 + $0xb8] sm:$0xff]
    %v77 = vld [vmem:[#allocation2 + $0xc0] sm:$0xff]
    %v78 = vld [vmem:[#allocation2 + $0xc8] sm:$0xff]
    %v79 = vld [vmem:[#allocation2 + $0xd0] sm:$0xff]
    %v80 = vld [vmem:[#allocation2 + $0xd8] sm:$0xff]
    %v81 = vld [vmem:[#allocation2 + $0xe0] sm:$0xff]
    %v82 = vld [vmem:[#allocation2 + $0xe8] sm:$0xff]
    %v83 = vld [vmem:[#allocation2 + $0xf0] sm:$0xff]
    %v84 = vld [vmem:[#allocation2 + $0xf8] sm:$0xff]
    %v85 = vld [vmem:[#allocation2 + $0x100] sm:$0xff]
    %v86 = vld [vmem:[#allocation2 + $0x108] sm:$0xff]
    %v87 = vld [vmem:[#allocation2 + $0x110] sm:$0xff]
    %v88 = vld [vmem:[#allocation2 + $0x118] sm:$0xff]
    %v89 = vld [vmem:[#allocation2 + $0x120] sm:$0xff]
    %v90 = vld [vmem:[#allocation2 + $0x128] sm:$0xff]
    %v91 = vpack.c.bf16 %v72, %v53
    %v92 = vpack.c.bf16 %v73, %v54
    %v93 = vpack.c.bf16 %v74, %v55
    %v94 = vpack.c.bf16 %v75, %v56
    %v95 = vpack.c.bf16 %v76, %v57
    %v96 = vpack.c.bf16 %v77, %v58
    %v97 = vpack.c.bf16 %v78, %v59
    %v98 = vpack.c.bf16 %v79, %v60
    %v99 = vpack.c.bf16 %v80, %v61
    %v100 = vpack.c.bf16 %v81, %v62
    %v101 = vpack.c.bf16 %v82, %v63
    %v102 = vpack.c.bf16 %v83, %v64
    %v103 = vpack.c.bf16 %v84, %v65
    %v104 = vpack.c.bf16 %v85, %v66
    %v105 = vpack.c.bf16 %v86, %v67
    %v106 = vpack.c.bf16 %v87, %v68
    %v107 = vpack.c.bf16 %v88, %v69
    %v108 = vpack.c.bf16 %v89, %v70
    %v109 = vpack.c.bf16 %v90, %v71
    %v110 = vld [vmem:[#allocation4] sm:$0xf]
    %v111 = vld [vmem:[#allocation4 + $0x4] sm:$0xf]
    %v112 = vld [vmem:[#allocation4 + $0x8] sm:$0xf]
    %v113 = vld [vmem:[#allocation4 + $0xc] sm:$0xf]
    %v114 = vld [vmem:[#allocation4 + $0x10] sm:$0xf]
    %v115 = vld [vmem:[#allocation4 + $0x14] sm:$0xf]
    %v116 = vld [vmem:[#allocation4 + $0x18] sm:$0xf]
    %v117 = vld [vmem:[#allocation4 + $0x1c] sm:$0xf]
    %v118 = vld [vmem:[#allocation4 + $0x20] sm:$0xf]
    %v119 = vld [vmem:[#allocation4 + $0x24] sm:$0xf]
    %v120 = vld [vmem:[#allocation4 + $0x28] sm:$0xf]
    %v121 = vld [vmem:[#allocation4 + $0x2c] sm:$0xf]
    %v122 = vld [vmem:[#allocation4 + $0x30] sm:$0xf]
    %v123 = vld [vmem:[#allocation4 + $0x34] sm:$0xf]
    %v124 = vld [vmem:[#allocation4 + $0x38] sm:$0xf]
    %v125 = vld [vmem:[#allocation4 + $0x3c] sm:$0xf]
    %v126 = vld [vmem:[#allocation4 + $0x40] sm:$0xf]
    %v127 = vld [vmem:[#allocation4 + $0x44] sm:$0xf]
    %v128 = vld [vmem:[#allocation4 + $0x48] sm:$0xf]
    %v129 = vld [vmem:[#allocation4 + $0x4c] sm:$0xf]
    %v130 = vld [vmem:[#allocation4 + $0x50] sm:$0xf]
    %v131 = vld [vmem:[#allocation4 + $0x54] sm:$0xf]
    %v132 = vld [vmem:[#allocation4 + $0x58] sm:$0xf]
    %v133 = vld [vmem:[#allocation4 + $0x5c] sm:$0xf]
    %v134 = vld [vmem:[#allocation4 + $0x60] sm:$0xf]
    %v135 = vld [vmem:[#allocation4 + $0x64] sm:$0xf]
    %v136 = vld [vmem:[#allocation4 + $0x68] sm:$0xf]
    %v137 = vld [vmem:[#allocation4 + $0x6c] sm:$0xf]
    %v138 = vld [vmem:[#allocation4 + $0x70] sm:$0xf]
    %v139 = vld [vmem:[#allocation4 + $0x74] sm:$0xf]
    %v140 = vld [vmem:[#allocation4 + $0x78] sm:$0xf]
    %v141 = vld [vmem:[#allocation4 + $0x7c] sm:$0xf]
    %v142 = vld [vmem:[#allocation4 + $0x80] sm:$0xf]
    %v143 = vld [vmem:[#allocation4 + $0x84] sm:$0xf]
    %v144 = vld [vmem:[#allocation4 + $0x88] sm:$0xf]
    %v145 = vld [vmem:[#allocation4 + $0x8c] sm:$0xf]
    %v146 = vld [vmem:[#allocation4 + $0x90] sm:$0xf]
    %v147 = vld [vmem:[#allocation4 + $0x94] sm:$0xf]
    %v148 = vld [vmem:[#allocation4 + $0x98] sm:$0xf]
    %v149 = vld [vmem:[#allocation4 + $0x9c] sm:$0xf]
    %v150 = vld [vmem:[#allocation4 + $0xa0] sm:$0xf]
    %v151 = vld [vmem:[#allocation4 + $0xa4] sm:$0xf]
    %v152 = vld [vmem:[#allocation4 + $0xa8] sm:$0xf]
    %v153 = vld [vmem:[#allocation4 + $0xac] sm:$0xf]
    %v154 = vld [vmem:[#allocation4 + $0xb0] sm:$0xf]
    %v155 = vld [vmem:[#allocation4 + $0xb4] sm:$0xf]
    %v156 = vld [vmem:[#allocation4 + $0xb8] sm:$0xf]
    %v157 = vld [vmem:[#allocation4 + $0xbc] sm:$0xf]
    %v158 = vld [vmem:[#allocation4 + $0xc0] sm:$0xf]
    %v159 = vld [vmem:[#allocation4 + $0xc4] sm:$0xf]
    %v160 = vld [vmem:[#allocation4 + $0xc8] sm:$0xf]
    %v161 = vld [vmem:[#allocation4 + $0xcc] sm:$0xf]
    %v162 = vld [vmem:[#allocation4 + $0xd0] sm:$0xf]
    %v163 = vld [vmem:[#allocation4 + $0xd4] sm:$0xf]
    %v164 = vld [vmem:[#allocation4 + $0xd8] sm:$0xf]
    %v165 = vld [vmem:[#allocation4 + $0xdc] sm:$0xf]
    %v166 = vld [vmem:[#allocation4 + $0xe0] sm:$0xf]
    %v167 = vld [vmem:[#allocation4 + $0xe4] sm:$0xf]
    %v168 = vld [vmem:[#allocation4 + $0xe8] sm:$0xf]
    %v169 = vld [vmem:[#allocation4 + $0xec] sm:$0xf]
    %v170 = vld [vmem:[#allocation4 + $0xf0] sm:$0xf]
    %v171 = vld [vmem:[#allocation4 + $0xf4] sm:$0xf]
    %v172 = vld [vmem:[#allocation4 + $0xf8] sm:$0xf]
    %v173 = vld [vmem:[#allocation4 + $0xfc] sm:$0xf]
    %v174 = vld [vmem:[#allocation4 + $0x100] sm:$0xf]
    %v175 = vld [vmem:[#allocation4 + $0x104] sm:$0xf]
    %v176 = vld [vmem:[#allocation4 + $0x108] sm:$0xf]
    %v177 = vld [vmem:[#allocation4 + $0x10c] sm:$0xf]
    %v178 = vld [vmem:[#allocation4 + $0x110] sm:$0xf]
    %v179 = vld [vmem:[#allocation4 + $0x114] sm:$0xf]
    %v180 = vld [vmem:[#allocation4 + $0x118] sm:$0xf]
    %v181 = vld [vmem:[#allocation4 + $0x11c] sm:$0xf]
    %v182 = vld [vmem:[#allocation4 + $0x120] sm:$0xf]
    %v183 = vld [vmem:[#allocation4 + $0x124] sm:$0xf]
    %v184 = vld [vmem:[#allocation4 + $0x128] sm:$0xf]
    %v185 = vld [vmem:[#allocation4 + $0x12c] sm:$0xf]
    %v186 = vld [vmem:[#allocation4 + $0x130] sm:$0xf]
    %v187 = vld [vmem:[#allocation4 + $0x134] sm:$0xf]
    %v188 = vld [vmem:[#allocation4 + $0x138] sm:$0xf]
    %v189 = vld [vmem:[#allocation4 + $0x13c] sm:$0xf]
    %v190 = vld [vmem:[#allocation4 + $0x140] sm:$0xf]
    %v191 = vld [vmem:[#allocation4 + $0x144] sm:$0xf]
    %v192 = vld [vmem:[#allocation4 + $0x148] sm:$0xf]
    %v193 = vld [vmem:[#allocation4 + $0x14c] sm:$0xf]
    %v194 = vld [vmem:[#allocation4 + $0x150] sm:$0xf]
    %v195 = vld [vmem:[#allocation4 + $0x154] sm:$0xf]
    %v196 = vld [vmem:[#allocation4 + $0x158] sm:$0xf]
    %v197 = vld [vmem:[#allocation4 + $0x15c] sm:$0xf]
    %v198 = vld [vmem:[#allocation4 + $0x160] sm:$0xf]
    %v199 = vld [vmem:[#allocation4 + $0x164] sm:$0xf]
    %v200 = vld [vmem:[#allocation4 + $0x168] sm:$0xf]
    %v201 = vld [vmem:[#allocation4 + $0x16c] sm:$0xf]
    %v202 = vld [vmem:[#allocation4 + $0x170] sm:$0xf]
    %v203 = vld [vmem:[#allocation4 + $0x174] sm:$0xf]
    %v204 = vld [vmem:[#allocation4 + $0x178] sm:$0xf]
    %v205 = vld [vmem:[#allocation4 + $0x17c] sm:$0xf]
    %v206 = vld [vmem:[#allocation4 + $0x180] sm:$0xf]
    %v207 = vld [vmem:[#allocation4 + $0x184] sm:$0xf]
    %v208 = vld [vmem:[#allocation4 + $0x188] sm:$0xf]
    %v209 = vld [vmem:[#allocation4 + $0x18c] sm:$0xf]
    %v210 = vld [vmem:[#allocation4 + $0x190] sm:$0xf]
    %v211 = vld [vmem:[#allocation4 + $0x194] sm:$0xf]
    %v212 = vld [vmem:[#allocation4 + $0x198] sm:$0xf]
    %v213 = vld [vmem:[#allocation4 + $0x19c] sm:$0xf]
    %v214 = vld [vmem:[#allocation4 + $0x1a0] sm:$0xf]
    %v215 = vld [vmem:[#allocation4 + $0x1a4] sm:$0xf]
    %v216 = vld [vmem:[#allocation4 + $0x1a8] sm:$0xf]
    %v217 = vld [vmem:[#allocation4 + $0x1ac] sm:$0xf]
    %v218 = vld [vmem:[#allocation4 + $0x1b0] sm:$0xf]
    %v219 = vld [vmem:[#allocation4 + $0x1b4] sm:$0xf]
    %v220 = vld [vmem:[#allocation4 + $0x1b8] sm:$0xf]
    %v221 = vld [vmem:[#allocation4 + $0x1bc] sm:$0xf]
    %v222 = vld [vmem:[#allocation4 + $0x1c0] sm:$0xf]
    %v223 = vld [vmem:[#allocation4 + $0x1c4] sm:$0xf]
    %v224 = vld [vmem:[#allocation4 + $0x1c8] sm:$0xf]
    %v225 = vld [vmem:[#allocation4 + $0x1cc] sm:$0xf]
    %v226 = vld [vmem:[#allocation4 + $0x1d0] sm:$0xf]
    %v227 = vld [vmem:[#allocation4 + $0x1d4] sm:$0xf]
    %v228 = vld [vmem:[#allocation4 + $0x1d8] sm:$0xf]
    %v229 = vld [vmem:[#allocation4 + $0x1dc] sm:$0xf]
    %v230 = vld [vmem:[#allocation4 + $0x1e0] sm:$0xf]
    %v231 = vld [vmem:[#allocation4 + $0x1e4] sm:$0xf]
    %v232 = vld [vmem:[#allocation4 + $0x1e8] sm:$0xf]
    %v233 = vld [vmem:[#allocation4 + $0x1ec] sm:$0xf]
    %v234 = vld [vmem:[#allocation4 + $0x1f0] sm:$0xf]
    %v235 = vld [vmem:[#allocation4 + $0x1f4] sm:$0xf]
    %v236 = vld [vmem:[#allocation4 + $0x1f8] sm:$0xf]
    %v237 = vld [vmem:[#allocation4 + $0x1fc] sm:$0xf]
    %v238 = vld [vmem:[#allocation4 + $0x200] sm:$0xf]
    %v239 = vld [vmem:[#allocation4 + $0x204] sm:$0xf]
    %v240 = vld [vmem:[#allocation4 + $0x208] sm:$0xf]
    %v241 = vld [vmem:[#allocation4 + $0x20c] sm:$0xf]
    %v242 = vld [vmem:[#allocation4 + $0x210] sm:$0xf]
    %v243 = vld [vmem:[#allocation4 + $0x214] sm:$0xf]
    %v244 = vld [vmem:[#allocation4 + $0x218] sm:$0xf]
    %v245 = vld [vmem:[#allocation4 + $0x21c] sm:$0xf]
    %v246 = vld [vmem:[#allocation4 + $0x220] sm:$0xf]
    %v247 = vld [vmem:[#allocation4 + $0x224] sm:$0xf]
    %v248 = vld [vmem:[#allocation4 + $0x228] sm:$0xf]
    %v249 = vld [vmem:[#allocation4 + $0x22c] sm:$0xf]
    %v250 = vld [vmem:[#allocation4 + $0x230] sm:$0xf]
    %v251 = vld [vmem:[#allocation4 + $0x234] sm:$0xf]
    %v252 = vld [vmem:[#allocation4 + $0x238] sm:$0xf]
    %v253 = vld [vmem:[#allocation4 + $0x23c] sm:$0xf]
    %v254 = vld [vmem:[#allocation4 + $0x240] sm:$0xf]
    %v255 = vld [vmem:[#allocation4 + $0x244] sm:$0xf]
    %v256 = vld [vmem:[#allocation4 + $0x248] sm:$0xf]
    %v257 = vld [vmem:[#allocation4 + $0x24c] sm:$0xf]
    %v258 = vld [vmem:[#allocation4 + $0x250] sm:$0xf]
    %v259 = vld [vmem:[#allocation4 + $0x254] sm:$0xf]
    %v260 = vld [vmem:[#allocation4 + $0x258] sm:$0xf]
    %v261 = vld [vmem:[#allocation4 + $0x25c] sm:$0xf]
    %v262 = vld [vmem:[#allocation4 + $0x260] sm:$0xf]
    %v263 = vld [vmem:[#allocation4 + $0x264] sm:$0xf]
    %v264 = vld [vmem:[#allocation4 + $0x268] sm:$0xf]
    %v265 = vld [vmem:[#allocation4 + $0x26c] sm:$0xf]
    %v266 = vld [vmem:[#allocation4 + $0x270] sm:$0xf]
    %v267 = vld [vmem:[#allocation4 + $0x274] sm:$0xf]
    %v268 = vld [vmem:[#allocation4 + $0x278] sm:$0xf]
    %v269 = vld [vmem:[#allocation4 + $0x27c] sm:$0xf]
    %v270 = vld [vmem:[#allocation4 + $0x280] sm:$0xf]
    %v271 = vld [vmem:[#allocation4 + $0x284] sm:$0xf]
    %v272 = vld [vmem:[#allocation4 + $0x288] sm:$0xf]
    %v273 = vld [vmem:[#allocation4 + $0x28c] sm:$0xf]
    %v274 = vld [vmem:[#allocation4 + $0x290] sm:$0xf]
    %v275 = vld [vmem:[#allocation4 + $0x294] sm:$0xf]
    %v276 = vld [vmem:[#allocation4 + $0x298] sm:$0xf]
    %v277 = vld [vmem:[#allocation4 + $0x29c] sm:$0xf]
    %v278 = vld [vmem:[#allocation4 + $0x2a0] sm:$0xf]
    %v279 = vld [vmem:[#allocation4 + $0x2a4] sm:$0xf]
    %v280 = vld [vmem:[#allocation4 + $0x2a8] sm:$0xf]
    %v281 = vld [vmem:[#allocation4 + $0x2ac] sm:$0xf]
    %v282 = vld [vmem:[#allocation4 + $0x2b0] sm:$0xf]
    %v283 = vld [vmem:[#allocation4 + $0x2b4] sm:$0xf]
    %v284 = vld [vmem:[#allocation4 + $0x2b8] sm:$0xf]
    %v285 = vld [vmem:[#allocation4 + $0x2bc] sm:$0xf]
    %v286 = vld [vmem:[#allocation4 + $0x2c0] sm:$0xf]
    %v287 = vld [vmem:[#allocation4 + $0x2c4] sm:$0xf]
    %v288 = vld [vmem:[#allocation4 + $0x2c8] sm:$0xf]
    %v289 = vld [vmem:[#allocation4 + $0x2cc] sm:$0xf]
    %v290 = vld [vmem:[#allocation4 + $0x2d0] sm:$0xf]
    %v291 = vld [vmem:[#allocation4 + $0x2d4] sm:$0xf]
    %v292 = vld [vmem:[#allocation4 + $0x2d8] sm:$0xf]
    %v293 = vld [vmem:[#allocation4 + $0x2dc] sm:$0xf]
    %v294 = vld [vmem:[#allocation4 + $0x2e0] sm:$0xf]
    %v295 = vld [vmem:[#allocation4 + $0x2e4] sm:$0xf]
    %v296 = vld [vmem:[#allocation4 + $0x2e8] sm:$0xf]
    %v297 = vld [vmem:[#allocation4 + $0x2ec] sm:$0xf]
    %v298 = vld [vmem:[#allocation4 + $0x2f0] sm:$0xf]
    %v299 = vld [vmem:[#allocation4 + $0x2f4] sm:$0xf]
    %v300 = vld [vmem:[#allocation4 + $0x2f8] sm:$0xf]
    %v301 = vld [vmem:[#allocation4 + $0x2fc] sm:$0xf]
    %v302 = vld [vmem:[#allocation4 + $0x300] sm:$0xf]
    %v303 = vld [vmem:[#allocation4 + $0x304] sm:$0xf]
    %v304 = vld [vmem:[#allocation4 + $0x308] sm:$0xf]
    %v305 = vld [vmem:[#allocation4 + $0x30c] sm:$0xf]
    %v306 = vld [vmem:[#allocation4 + $0x310] sm:$0xf]
    %v307 = vld [vmem:[#allocation4 + $0x314] sm:$0xf]
    %v308 = vld [vmem:[#allocation4 + $0x318] sm:$0xf]
    %v309 = vld [vmem:[#allocation4 + $0x31c] sm:$0xf]
    %v310 = vld [vmem:[#allocation4 + $0x320] sm:$0xf]
    %v311 = vld [vmem:[#allocation4 + $0x324] sm:$0xf]
    %v312 = vld [vmem:[#allocation4 + $0x328] sm:$0xf]
    %v313 = vld [vmem:[#allocation4 + $0x32c] sm:$0xf]
    %v314 = vld [vmem:[#allocation4 + $0x330] sm:$0xf]
    %v315 = vld [vmem:[#allocation4 + $0x334] sm:$0xf]
    %v316 = vld [vmem:[#allocation4 + $0x338] sm:$0xf]
    %v317 = vld [vmem:[#allocation4 + $0x33c] sm:$0xf]
    %v318 = vld [vmem:[#allocation4 + $0x340] sm:$0xf]
    %v319 = vld [vmem:[#allocation4 + $0x344] sm:$0xf]
    %v320 = vld [vmem:[#allocation4 + $0x348] sm:$0xf]
    %v321 = vld [vmem:[#allocation4 + $0x34c] sm:$0xf]
    %v322 = vld [vmem:[#allocation4 + $0x350] sm:$0xf]
    %v323 = vld [vmem:[#allocation4 + $0x354] sm:$0xf]
    %v324 = vld [vmem:[#allocation4 + $0x358] sm:$0xf]
    %v325 = vld [vmem:[#allocation4 + $0x35c] sm:$0xf]
    %v326 = vld [vmem:[#allocation4 + $0x360] sm:$0xf]
    %v327 = vld [vmem:[#allocation4 + $0x364] sm:$0xf]
    %v328 = vld [vmem:[#allocation4 + $0x368] sm:$0xf]
    %v329 = vld [vmem:[#allocation4 + $0x36c] sm:$0xf]
    %v330 = vld [vmem:[#allocation4 + $0x370] sm:$0xf]
    %v331 = vld [vmem:[#allocation4 + $0x374] sm:$0xf]
    %v332 = vld [vmem:[#allocation4 + $0x378] sm:$0xf]
    %v333 = vld [vmem:[#allocation4 + $0x37c] sm:$0xf]
    %v334 = vld [vmem:[#allocation4 + $0x380] sm:$0xf]
    %v335 = vld [vmem:[#allocation4 + $0x384] sm:$0xf]
    %v336 = vld [vmem:[#allocation4 + $0x388] sm:$0xf]
    %v337 = vld [vmem:[#allocation4 + $0x38c] sm:$0xf]
    %v338 = vld [vmem:[#allocation4 + $0x390] sm:$0xf]
    %v339 = vld [vmem:[#allocation4 + $0x394] sm:$0xf]
    %v340 = vld [vmem:[#allocation4 + $0x398] sm:$0xf]
    %v341 = vld [vmem:[#allocation4 + $0x39c] sm:$0xf]
    %v342 = vld [vmem:[#allocation4 + $0x3a0] sm:$0xf]
    %v343 = vld [vmem:[#allocation4 + $0x3a4] sm:$0xf]
    %v344 = vld [vmem:[#allocation4 + $0x3a8] sm:$0xf]
    %v345 = vld [vmem:[#allocation4 + $0x3ac] sm:$0xf]
    %v346 = vld [vmem:[#allocation4 + $0x3b0] sm:$0xf]
    %v347 = vld [vmem:[#allocation4 + $0x3b4] sm:$0xf]
    %v348 = vld [vmem:[#allocation4 + $0x3b8] sm:$0xf]
    %v349 = vld [vmem:[#allocation4 + $0x3bc] sm:$0xf]
    %v350 = vld [vmem:[#allocation4 + $0x3c0] sm:$0xf]
    %v351 = vld [vmem:[#allocation4 + $0x3c4] sm:$0xf]
    %v352 = vld [vmem:[#allocation4 + $0x3c8] sm:$0xf]
    %v353 = vld [vmem:[#allocation4 + $0x3cc] sm:$0xf]
    %v354 = vld [vmem:[#allocation4 + $0x3d0] sm:$0xf]
    %v355 = vld [vmem:[#allocation4 + $0x3d4] sm:$0xf]
    %v356 = vld [vmem:[#allocation4 + $0x3d8] sm:$0xf]
    %v357 = vld [vmem:[#allocation4 + $0x3dc] sm:$0xf]
    %v358 = vld [vmem:[#allocation4 + $0x3e0] sm:$0xf]
    %v359 = vld [vmem:[#allocation4 + $0x3e4] sm:$0xf]
    %v360 = vld [vmem:[#allocation4 + $0x3e8] sm:$0xf]
    %v361 = vld [vmem:[#allocation4 + $0x3ec] sm:$0xf]
    %v362 = vld [vmem:[#allocation4 + $0x3f0] sm:$0xf]
    %v363 = vld [vmem:[#allocation4 + $0x3f4] sm:$0xf]
    %v364 = vld [vmem:[#allocation4 + $0x3f8] sm:$0xf]
    %v365 = vld [vmem:[#allocation4 + $0x3fc] sm:$0xf]
    %v366 = vld [vmem:[#allocation4 + $0x400] sm:$0xf]
    %v367 = vld [vmem:[#allocation4 + $0x404] sm:$0xf]
    %v368 = vld [vmem:[#allocation4 + $0x408] sm:$0xf]
    %v369 = vld [vmem:[#allocation4 + $0x40c] sm:$0xf]
    %v370 = vld [vmem:[#allocation4 + $0x410] sm:$0xf]
    %v371 = vld [vmem:[#allocation4 + $0x414] sm:$0xf]
    %v372 = vld [vmem:[#allocation4 + $0x418] sm:$0xf]
    %v373 = vld [vmem:[#allocation4 + $0x41c] sm:$0xf]
    %v374 = vld [vmem:[#allocation4 + $0x420] sm:$0xf]
    %v375 = vld [vmem:[#allocation4 + $0x424] sm:$0xf]
    %v376 = vld [vmem:[#allocation4 + $0x428] sm:$0xf]
    %v377 = vld [vmem:[#allocation4 + $0x42c] sm:$0xf]
    %v378 = vld [vmem:[#allocation4 + $0x430] sm:$0xf]
    %v379 = vld [vmem:[#allocation4 + $0x434] sm:$0xf]
    %v380 = vld [vmem:[#allocation4 + $0x438] sm:$0xf]
    %v381 = vld [vmem:[#allocation4 + $0x43c] sm:$0xf]
    %v382 = vld [vmem:[#allocation4 + $0x440] sm:$0xf]
    %v383 = vld [vmem:[#allocation4 + $0x444] sm:$0xf]
    %v384 = vld [vmem:[#allocation4 + $0x448] sm:$0xf]
    %v385 = vld [vmem:[#allocation4 + $0x44c] sm:$0xf]
    %v386 = vld [vmem:[#allocation4 + $0x450] sm:$0xf]
    %v387 = vld [vmem:[#allocation4 + $0x454] sm:$0xf]
    %v388 = vld [vmem:[#allocation4 + $0x458] sm:$0xf]
    %v389 = vld [vmem:[#allocation4 + $0x45c] sm:$0xf]
    %v390 = vld [vmem:[#allocation4 + $0x460] sm:$0xf]
    %v391 = vld [vmem:[#allocation4 + $0x464] sm:$0xf]
    %v392 = vld [vmem:[#allocation4 + $0x468] sm:$0xf]
    %v393 = vld [vmem:[#allocation4 + $0x46c] sm:$0xf]
    %v394 = vld [vmem:[#allocation4 + $0x470] sm:$0xf]
    %v395 = vld [vmem:[#allocation4 + $0x474] sm:$0xf]
    %v396 = vld [vmem:[#allocation4 + $0x478] sm:$0xf]
    %v397 = vld [vmem:[#allocation4 + $0x47c] sm:$0xf]
    %v398 = vld [vmem:[#allocation4 + $0x480] sm:$0xf]
    %v399 = vld [vmem:[#allocation4 + $0x484] sm:$0xf]
    %v400 = vld [vmem:[#allocation4 + $0x488] sm:$0xf]
    %v401 = vld [vmem:[#allocation4 + $0x48c] sm:$0xf]
    %v402 = vld [vmem:[#allocation4 + $0x490] sm:$0xf]
    %v403 = vld [vmem:[#allocation4 + $0x494] sm:$0xf]
    %v404 = vld [vmem:[%s2] sm:$0x1]
    %v406 = vperm.slane %v404, 0
    %v702 = vunpack.c.l.b16 %v110
    %v703 = vunpack.c.l.b16 %v111
    %v704 = vunpack.c.l.b16 %v112
    %v705 = vunpack.c.l.b16 %v113
    %v706 = vunpack.c.l.b16 %v114
    %v707 = vunpack.c.l.b16 %v115
    %v708 = vunpack.c.l.b16 %v116
    %v709 = vunpack.c.l.b16 %v117
    %v710 = vunpack.c.l.b16 %v118
    %v711 = vunpack.c.l.b16 %v119
    %v712 = vunpack.c.l.b16 %v120
    %v713 = vunpack.c.l.b16 %v121
    %v714 = vunpack.c.l.b16 %v122
    %v715 = vunpack.c.l.b16 %v123
    %v716 = vunpack.c.l.b16 %v124
    %v717 = vunpack.c.l.b16 %v125
    %v718 = vunpack.c.l.b16 %v126
    %v719 = vunpack.c.l.b16 %v127
    %v720 = vunpack.c.l.b16 %v128
    %v721 = vunpack.c.l.b16 %v129
    %v722 = vunpack.c.l.b16 %v130
    %v723 = vunpack.c.l.b16 %v131
    %v724 = vunpack.c.l.b16 %v132
    %v725 = vunpack.c.l.b16 %v133
    %v726 = vunpack.c.l.b16 %v134
    %v727 = vunpack.c.l.b16 %v135
    %v728 = vunpack.c.l.b16 %v136
    %v729 = vunpack.c.l.b16 %v137
    %v730 = vunpack.c.l.b16 %v138
    %v731 = vunpack.c.l.b16 %v139
    %v732 = vunpack.c.l.b16 %v140
    %v733 = vunpack.c.l.b16 %v141
    %v734 = vunpack.c.l.b16 %v142
    %v735 = vunpack.c.l.b16 %v143
    %v736 = vunpack.c.l.b16 %v144
    %v737 = vunpack.c.l.b16 %v145
    %v738 = vunpack.c.l.b16 %v146
    %v739 = vunpack.c.l.b16 %v147
    %v740 = vunpack.c.l.b16 %v148
    %v741 = vunpack.c.l.b16 %v149
    %v742 = vunpack.c.l.b16 %v150
    %v743 = vunpack.c.l.b16 %v151
    %v744 = vunpack.c.l.b16 %v152
    %v745 = vunpack.c.l.b16 %v153
    %v746 = vunpack.c.l.b16 %v154
    %v747 = vunpack.c.l.b16 %v155
    %v748 = vunpack.c.l.b16 %v156
    %v749 = vunpack.c.l.b16 %v157
    %v750 = vunpack.c.l.b16 %v158
    %v751 = vunpack.c.l.b16 %v159
    %v752 = vunpack.c.l.b16 %v160
    %v753 = vunpack.c.l.b16 %v161
    %v754 = vunpack.c.l.b16 %v162
    %v755 = vunpack.c.l.b16 %v163
    %v756 = vunpack.c.l.b16 %v164
    %v757 = vunpack.c.l.b16 %v165
    %v758 = vunpack.c.l.b16 %v166
    %v759 = vunpack.c.l.b16 %v167
    %v760 = vunpack.c.l.b16 %v168
    %v761 = vunpack.c.l.b16 %v169
    %v762 = vunpack.c.l.b16 %v170
    %v763 = vunpack.c.l.b16 %v171
    %v764 = vunpack.c.l.b16 %v172
    %v765 = vunpack.c.l.b16 %v173
    %v766 = vunpack.c.l.b16 %v174
    %v767 = vunpack.c.l.b16 %v175
    %v768 = vunpack.c.l.b16 %v176
    %v769 = vunpack.c.l.b16 %v177
    %v770 = vunpack.c.l.b16 %v178
    %v771 = vunpack.c.l.b16 %v179
    %v772 = vunpack.c.l.b16 %v180
    %v773 = vunpack.c.l.b16 %v181
    %v774 = vunpack.c.l.b16 %v182
    %v775 = vunpack.c.l.b16 %v183
    %v776 = vunpack.c.l.b16 %v184
    %v777 = vunpack.c.l.b16 %v185
    %v778 = vunpack.c.l.b16 %v186
    %v779 = vunpack.c.l.b16 %v187
    %v780 = vunpack.c.l.b16 %v188
    %v781 = vunpack.c.l.b16 %v189
    %v782 = vunpack.c.l.b16 %v190
    %v783 = vunpack.c.l.b16 %v191
    %v784 = vunpack.c.l.b16 %v192
    %v785 = vunpack.c.l.b16 %v193
    %v786 = vunpack.c.l.b16 %v194
    %v787 = vunpack.c.l.b16 %v195
    %v788 = vunpack.c.l.b16 %v196
    %v789 = vunpack.c.l.b16 %v197
    %v790 = vunpack.c.l.b16 %v198
    %v791 = vunpack.c.l.b16 %v199
    %v792 = vunpack.c.l.b16 %v200
    %v793 = vunpack.c.l.b16 %v201
    %v794 = vunpack.c.l.b16 %v202
    %v795 = vunpack.c.l.b16 %v203
    %v796 = vunpack.c.l.b16 %v204
    %v797 = vunpack.c.l.b16 %v205
    %v798 = vunpack.c.l.b16 %v206
    %v799 = vunpack.c.l.b16 %v207
    %v800 = vunpack.c.l.b16 %v208
    %v801 = vunpack.c.l.b16 %v209
    %v802 = vunpack.c.l.b16 %v210
    %v803 = vunpack.c.l.b16 %v211
    %v804 = vunpack.c.l.b16 %v212
    %v805 = vunpack.c.l.b16 %v213
    %v806 = vunpack.c.l.b16 %v214
    %v807 = vunpack.c.l.b16 %v215
    %v808 = vunpack.c.l.b16 %v216
    %v809 = vunpack.c.l.b16 %v217
    %v810 = vunpack.c.l.b16 %v218
    %v811 = vunpack.c.l.b16 %v219
    %v812 = vunpack.c.l.b16 %v220
    %v813 = vunpack.c.l.b16 %v221
    %v814 = vunpack.c.l.b16 %v222
    %v815 = vunpack.c.l.b16 %v223
    %v816 = vunpack.c.l.b16 %v224
    %v817 = vunpack.c.l.b16 %v225
    %v818 = vunpack.c.l.b16 %v226
    %v819 = vunpack.c.l.b16 %v227
    %v820 = vunpack.c.l.b16 %v228
    %v821 = vunpack.c.l.b16 %v229
    %v822 = vunpack.c.l.b16 %v230
    %v823 = vunpack.c.l.b16 %v231
    %v824 = vunpack.c.l.b16 %v232
    %v825 = vunpack.c.l.b16 %v233
    %v826 = vunpack.c.l.b16 %v234
    %v827 = vunpack.c.l.b16 %v235
    %v828 = vunpack.c.l.b16 %v236
    %v829 = vunpack.c.l.b16 %v237
    %v830 = vunpack.c.l.b16 %v238
    %v831 = vunpack.c.l.b16 %v239
    %v832 = vunpack.c.l.b16 %v240
    %v833 = vunpack.c.l.b16 %v241
    %v834 = vunpack.c.l.b16 %v242
    %v835 = vunpack.c.l.b16 %v243
    %v836 = vunpack.c.l.b16 %v244
    %v837 = vunpack.c.l.b16 %v245
    %v838 = vunpack.c.l.b16 %v246
    %v839 = vunpack.c.l.b16 %v247
    %v840 = vunpack.c.l.b16 %v248
    %v841 = vunpack.c.l.b16 %v249
    %v842 = vunpack.c.l.b16 %v250
    %v843 = vunpack.c.l.b16 %v251
    %v844 = vunpack.c.l.b16 %v252
    %v845 = vunpack.c.l.b16 %v253
    %v846 = vunpack.c.l.b16 %v254
    %v847 = vunpack.c.l.b16 %v255
    %v848 = vunpack.c.l.b16 %v256
    %v849 = vunpack.c.l.b16 %v257
    %v850 = vunpack.c.l.b16 %v258
    %v851 = vunpack.c.l.b16 %v259
    %v852 = vunpack.c.l.b16 %v260
    %v853 = vunpack.c.l.b16 %v261
    %v854 = vunpack.c.l.b16 %v262
    %v855 = vunpack.c.l.b16 %v263
    %v856 = vunpack.c.l.b16 %v264
    %v857 = vunpack.c.l.b16 %v265
    %v858 = vunpack.c.l.b16 %v266
    %v859 = vunpack.c.l.b16 %v267
    %v860 = vunpack.c.l.b16 %v268
    %v861 = vunpack.c.l.b16 %v269
    %v862 = vunpack.c.l.b16 %v270
    %v863 = vunpack.c.l.b16 %v271
    %v864 = vunpack.c.l.b16 %v272
    %v865 = vunpack.c.l.b16 %v273
    %v866 = vunpack.c.l.b16 %v274
    %v867 = vunpack.c.l.b16 %v275
    %v868 = vunpack.c.l.b16 %v276
    %v869 = vunpack.c.l.b16 %v277
    %v870 = vunpack.c.l.b16 %v278
    %v871 = vunpack.c.l.b16 %v279
    %v872 = vunpack.c.l.b16 %v280
    %v873 = vunpack.c.l.b16 %v281
    %v874 = vunpack.c.l.b16 %v282
    %v875 = vunpack.c.l.b16 %v283
    %v876 = vunpack.c.l.b16 %v284
    %v877 = vunpack.c.l.b16 %v285
    %v878 = vunpack.c.l.b16 %v286
    %v879 = vunpack.c.l.b16 %v287
    %v880 = vunpack.c.l.b16 %v288
    %v881 = vunpack.c.l.b16 %v289
    %v882 = vunpack.c.l.b16 %v290
    %v883 = vunpack.c.l.b16 %v291
    %v884 = vunpack.c.l.b16 %v292
    %v885 = vunpack.c.l.b16 %v293
    %v886 = vunpack.c.l.b16 %v294
    %v887 = vunpack.c.l.b16 %v295
    %v888 = vunpack.c.l.b16 %v296
    %v889 = vunpack.c.l.b16 %v297
    %v890 = vunpack.c.l.b16 %v298
    %v891 = vunpack.c.l.b16 %v299
    %v892 = vunpack.c.l.b16 %v300
    %v893 = vunpack.c.l.b16 %v301
    %v894 = vunpack.c.l.b16 %v302
    %v895 = vunpack.c.l.b16 %v303
    %v896 = vunpack.c.l.b16 %v304
    %v897 = vunpack.c.l.b16 %v305
    %v898 = vunpack.c.l.b16 %v306
    %v899 = vunpack.c.l.b16 %v307
    %v900 = vunpack.c.l.b16 %v308
    %v901 = vunpack.c.l.b16 %v309
    %v902 = vunpack.c.l.b16 %v310
    %v903 = vunpack.c.l.b16 %v311
    %v904 = vunpack.c.l.b16 %v312
    %v905 = vunpack.c.l.b16 %v313
    %v906 = vunpack.c.l.b16 %v314
    %v907 = vunpack.c.l.b16 %v315
    %v908 = vunpack.c.l.b16 %v316
    %v909 = vunpack.c.l.b16 %v317
    %v910 = vunpack.c.l.b16 %v318
    %v911 = vunpack.c.l.b16 %v319
    %v912 = vunpack.c.l.b16 %v320
    %v913 = vunpack.c.l.b16 %v321
    %v914 = vunpack.c.l.b16 %v322
    %v915 = vunpack.c.l.b16 %v323
    %v916 = vunpack.c.l.b16 %v324
    %v917 = vunpack.c.l.b16 %v325
    %v918 = vunpack.c.l.b16 %v326
    %v919 = vunpack.c.l.b16 %v327
    %v920 = vunpack.c.l.b16 %v328
    %v921 = vunpack.c.l.b16 %v329
    %v922 = vunpack.c.l.b16 %v330
    %v923 = vunpack.c.l.b16 %v331
    %v924 = vunpack.c.l.b16 %v332
    %v925 = vunpack.c.l.b16 %v333
    %v926 = vunpack.c.l.b16 %v334
    %v927 = vunpack.c.l.b16 %v335
    %v928 = vunpack.c.l.b16 %v336
    %v929 = vunpack.c.l.b16 %v337
    %v930 = vunpack.c.l.b16 %v338
    %v931 = vunpack.c.l.b16 %v339
    %v932 = vunpack.c.l.b16 %v340
    %v933 = vunpack.c.l.b16 %v341
    %v934 = vunpack.c.l.b16 %v342
    %v935 = vunpack.c.l.b16 %v343
    %v936 = vunpack.c.l.b16 %v344
    %v937 = vunpack.c.l.b16 %v345
    %v938 = vunpack.c.l.b16 %v346
    %v939 = vunpack.c.l.b16 %v347
    %v940 = vunpack.c.l.b16 %v348
    %v941 = vunpack.c.l.b16 %v349
    %v942 = vunpack.c.l.b16 %v350
    %v943 = vunpack.c.l.b16 %v351
    %v944 = vunpack.c.l.b16 %v352
    %v945 = vunpack.c.l.b16 %v353
    %v946 = vunpack.c.l.b16 %v354
    %v947 = vunpack.c.l.b16 %v355
    %v948 = vunpack.c.l.b16 %v356
    %v949 = vunpack.c.l.b16 %v357
    %v950 = vunpack.c.l.b16 %v358
    %v951 = vunpack.c.l.b16 %v359
    %v952 = vunpack.c.l.b16 %v360
    %v953 = vunpack.c.l.b16 %v361
    %v954 = vunpack.c.l.b16 %v362
    %v955 = vunpack.c.l.b16 %v363
    %v956 = vunpack.c.l.b16 %v364
    %v957 = vunpack.c.l.b16 %v365
    %v958 = vunpack.c.l.b16 %v366
    %v959 = vunpack.c.l.b16 %v367
    %v960 = vunpack.c.l.b16 %v368
    %v961 = vunpack.c.l.b16 %v369
    %v962 = vunpack.c.l.b16 %v370
    %v963 = vunpack.c.l.b16 %v371
    %v964 = vunpack.c.l.b16 %v372
    %v965 = vunpack.c.l.b16 %v373
    %v966 = vunpack.c.l.b16 %v374
    %v967 = vunpack.c.l.b16 %v375
    %v968 = vunpack.c.l.b16 %v376
    %v969 = vunpack.c.l.b16 %v377
    %v970 = vunpack.c.l.b16 %v378
    %v971 = vunpack.c.l.b16 %v379
    %v972 = vunpack.c.l.b16 %v380
    %v973 = vunpack.c.l.b16 %v381
    %v974 = vunpack.c.l.b16 %v382
    %v975 = vunpack.c.l.b16 %v383
    %v976 = vunpack.c.l.b16 %v384
    %v977 = vunpack.c.l.b16 %v385
    %v978 = vunpack.c.l.b16 %v386
    %v979 = vunpack.c.l.b16 %v387
    %v980 = vunpack.c.l.b16 %v388
    %v981 = vunpack.c.l.b16 %v389
    %v982 = vunpack.c.l.b16 %v390
    %v983 = vunpack.c.l.b16 %v391
    %v984 = vunpack.c.l.b16 %v392
    %v985 = vunpack.c.l.b16 %v393
    %v986 = vunpack.c.l.b16 %v394
    %v987 = vunpack.c.l.b16 %v395
    %v988 = vunpack.c.l.b16 %v396
    %v989 = vunpack.c.l.b16 %v397
    %v990 = vunpack.c.l.b16 %v398
    %v991 = vunpack.c.l.b16 %v399
    %v992 = vunpack.c.l.b16 %v400
    %v993 = vunpack.c.l.b16 %v401
    %v994 = vunpack.c.l.b16 %v402
    %v995 = vunpack.c.l.b16 %v403
    %v996 = vpack.c.b16 %v703, %v702
    %v997 = vpack.c.b16 %v705, %v704
    %v998 = vpack.c.b16 %v707, %v706
    %v999 = vpack.c.b16 %v709, %v708
    %v1000 = vpack.c.b16 %v711, %v710
    %v1001 = vpack.c.b16 %v713, %v712
    %v1002 = vpack.c.b16 %v715, %v714
    %v1003 = vpack.c.b16 %v717, %v716
    %v1004 = vpack.c.b16 %v719, %v718
    %v1005 = vpack.c.b16 %v721, %v720
    %v1006 = vpack.c.b16 %v723, %v722
    %v1007 = vpack.c.b16 %v725, %v724
    %v1008 = vpack.c.b16 %v727, %v726
    %v1009 = vpack.c.b16 %v729, %v728
    %v1010 = vpack.c.b16 %v731, %v730
    %v1011 = vpack.c.b16 %v733, %v732
    %v1012 = vpack.c.b16 %v735, %v734
    %v1013 = vpack.c.b16 %v737, %v736
    %v1014 = vpack.c.b16 %v739, %v738
    %v1015 = vpack.c.b16 %v741, %v740
    %v1016 = vpack.c.b16 %v743, %v742
    %v1017 = vpack.c.b16 %v745, %v744
    %v1018 = vpack.c.b16 %v747, %v746
    %v1019 = vpack.c.b16 %v749, %v748
    %v1020 = vpack.c.b16 %v751, %v750
    %v1021 = vpack.c.b16 %v753, %v752
    %v1022 = vpack.c.b16 %v755, %v754
    %v1023 = vpack.c.b16 %v757, %v756
    %v1024 = vpack.c.b16 %v759, %v758
    %v1025 = vpack.c.b16 %v761, %v760
    %v1026 = vpack.c.b16 %v763, %v762
    %v1027 = vpack.c.b16 %v765, %v764
    %v1028 = vpack.c.b16 %v767, %v766
    %v1029 = vpack.c.b16 %v769, %v768
    %v1030 = vpack.c.b16 %v771, %v770
    %v1031 = vpack.c.b16 %v773, %v772
    %v1032 = vpack.c.b16 %v775, %v774
    %v1033 = vpack.c.b16 %v777, %v776
    %v1034 = vpack.c.b16 %v779, %v778
    %v1035 = vpack.c.b16 %v781, %v780
    %v1036 = vpack.c.b16 %v783, %v782
    %v1037 = vpack.c.b16 %v785, %v784
    %v1038 = vpack.c.b16 %v787, %v786
    %v1039 = vpack.c.b16 %v789, %v788
    %v1040 = vpack.c.b16 %v791, %v790
    %v1041 = vpack.c.b16 %v793, %v792
    %v1042 = vpack.c.b16 %v795, %v794
    %v1043 = vpack.c.b16 %v797, %v796
    %v1044 = vpack.c.b16 %v799, %v798
    %v1045 = vpack.c.b16 %v801, %v800
    %v1046 = vpack.c.b16 %v803, %v802
    %v1047 = vpack.c.b16 %v805, %v804
    %v1048 = vpack.c.b16 %v807, %v806
    %v1049 = vpack.c.b16 %v809, %v808
    %v1050 = vpack.c.b16 %v811, %v810
    %v1051 = vpack.c.b16 %v813, %v812
    %v1052 = vpack.c.b16 %v815, %v814
    %v1053 = vpack.c.b16 %v817, %v816
    %v1054 = vpack.c.b16 %v819, %v818
    %v1055 = vpack.c.b16 %v821, %v820
    %v1056 = vpack.c.b16 %v823, %v822
    %v1057 = vpack.c.b16 %v825, %v824
    %v1058 = vpack.c.b16 %v827, %v826
    %v1059 = vpack.c.b16 %v829, %v828
    %v1060 = vpack.c.b16 %v831, %v830
    %v1061 = vpack.c.b16 %v833, %v832
    %v1062 = vpack.c.b16 %v835, %v834
    %v1063 = vpack.c.b16 %v837, %v836
    %v1064 = vpack.c.b16 %v839, %v838
    %v1065 = vpack.c.b16 %v841, %v840
    %v1066 = vpack.c.b16 %v843, %v842
    %v1067 = vpack.c.b16 %v845, %v844
    %v1068 = vpack.c.b16 %v847, %v846
    %v1069 = vpack.c.b16 %v849, %v848
    %v1070 = vpack.c.b16 %v851, %v850
    %v1071 = vpack.c.b16 %v853, %v852
    %v1072 = vpack.c.b16 %v855, %v854
    %v1073 = vpack.c.b16 %v857, %v856
    %v1074 = vpack.c.b16 %v859, %v858
    %v1075 = vpack.c.b16 %v861, %v860
    %v1076 = vpack.c.b16 %v863, %v862
    %v1077 = vpack.c.b16 %v865, %v864
    %v1078 = vpack.c.b16 %v867, %v866
    %v1079 = vpack.c.b16 %v869, %v868
    %v1080 = vpack.c.b16 %v871, %v870
    %v1081 = vpack.c.b16 %v873, %v872
    %v1082 = vpack.c.b16 %v875, %v874
    %v1083 = vpack.c.b16 %v877, %v876
    %v1084 = vpack.c.b16 %v879, %v878
    %v1085 = vpack.c.b16 %v881, %v880
    %v1086 = vpack.c.b16 %v883, %v882
    %v1087 = vpack.c.b16 %v885, %v884
    %v1088 = vpack.c.b16 %v887, %v886
    %v1089 = vpack.c.b16 %v889, %v888
    %v1090 = vpack.c.b16 %v891, %v890
    %v1091 = vpack.c.b16 %v893, %v892
    %v1092 = vpack.c.b16 %v895, %v894
    %v1093 = vpack.c.b16 %v897, %v896
    %v1094 = vpack.c.b16 %v899, %v898
    %v1095 = vpack.c.b16 %v901, %v900
    %v1096 = vpack.c.b16 %v903, %v902
    %v1097 = vpack.c.b16 %v905, %v904
    %v1098 = vpack.c.b16 %v907, %v906
    %v1099 = vpack.c.b16 %v909, %v908
    %v1100 = vpack.c.b16 %v911, %v910
    %v1101 = vpack.c.b16 %v913, %v912
    %v1102 = vpack.c.b16 %v915, %v914
    %v1103 = vpack.c.b16 %v917, %v916
    %v1104 = vpack.c.b16 %v919, %v918
    %v1105 = vpack.c.b16 %v921, %v920
    %v1106 = vpack.c.b16 %v923, %v922
    %v1107 = vpack.c.b16 %v925, %v924
    %v1108 = vpack.c.b16 %v927, %v926
    %v1109 = vpack.c.b16 %v929, %v928
    %v1110 = vpack.c.b16 %v931, %v930
    %v1111 = vpack.c.b16 %v933, %v932
    %v1112 = vpack.c.b16 %v935, %v934
    %v1113 = vpack.c.b16 %v937, %v936
    %v1114 = vpack.c.b16 %v939, %v938
    %v1115 = vpack.c.b16 %v941, %v940
    %v1116 = vpack.c.b16 %v943, %v942
    %v1117 = vpack.c.b16 %v945, %v944
    %v1118 = vpack.c.b16 %v947, %v946
    %v1119 = vpack.c.b16 %v949, %v948
    %v1120 = vpack.c.b16 %v951, %v950
    %v1121 = vpack.c.b16 %v953, %v952
    %v1122 = vpack.c.b16 %v955, %v954
    %v1123 = vpack.c.b16 %v957, %v956
    %v1124 = vpack.c.b16 %v959, %v958
    %v1125 = vpack.c.b16 %v961, %v960
    %v1126 = vpack.c.b16 %v963, %v962
    %v1127 = vpack.c.b16 %v965, %v964
    %v1128 = vpack.c.b16 %v967, %v966
    %v1129 = vpack.c.b16 %v969, %v968
    %v1130 = vpack.c.b16 %v971, %v970
    %v1131 = vpack.c.b16 %v973, %v972
    %v1132 = vpack.c.b16 %v975, %v974
    %v1133 = vpack.c.b16 %v977, %v976
    %v1134 = vpack.c.b16 %v979, %v978
    %v1135 = vpack.c.b16 %v981, %v980
    %v1136 = vpack.c.b16 %v983, %v982
    %v1137 = vpack.c.b16 %v985, %v984
    %v1138 = vpack.c.b16 %v987, %v986
    %v1139 = vpack.c.b16 %v989, %v988
    %v1140 = vpack.c.b16 %v991, %v990
    %v1141 = vpack.c.b16 %v993, %v992
    %v1142 = vpack.c.b16 %v995, %v994
    %vm1290 = vcmask 392192
    %v1292 = vsel %vm1290, %v109, 0
    %1294 = vmatpush.bf16.msra.mxu0 %v1003
    %1295 = vmatpush.bf16.msra.mxu0 %v1002
    %1296 = vmatpush.bf16.msra.mxu0 %v1001
    %1297 = vmatpush.bf16.msra.mxu0 %v1000
    %1298 = vmatpush.bf16.msra.mxu0 %v999
    %1299 = vmatpush.bf16.msra.mxu0 %v998
    %1300 = vmatpush.bf16.msra.mxu0 %v997
    %1301 = vmatpush.bf16.msra.mxu0 %v996
    %1302 = vmatmul.bf16.gmra.mxu0 %v91
    %v1303 = vpop.f32.mrf.mxu0
    %v1304 = vadd.f32 %v406, %v1303
    %v1305 = vpop.f32.mrf.mxu0
    %v1306 = vadd.f32 %v406, %v1305
    %1307 = vdwg.mxu0
    %1308 = vmatpush.bf16.msra.mxu0 %v1011
    %1309 = vmatpush.bf16.msra.mxu0 %v1010
    %1310 = vmatpush.bf16.msra.mxu0 %v1009
    %1311 = vmatpush.bf16.msra.mxu0 %v1008
    %1312 = vmatpush.bf16.msra.mxu0 %v1007
    %1313 = vmatpush.bf16.msra.mxu0 %v1006
    %1314 = vmatpush.bf16.msra.mxu0 %v1005
    %1315 = vmatpush.bf16.msra.mxu0 %v1004
    %1316 = vmatmul.bf16.gmra.mxu0 %v92
    %v1317 = vpop.f32.mrf.mxu0
    %v1318 = vadd.f32 %v1304, %v1317
    %v1319 = vpop.f32.mrf.mxu0
    %v1320 = vadd.f32 %v1306, %v1319
    %1321 = vdwg.mxu0
    %1322 = vmatpush.bf16.msra.mxu0 %v1019
    %1323 = vmatpush.bf16.msra.mxu0 %v1018
    %1324 = vmatpush.bf16.msra.mxu0 %v1017
    %1325 = vmatpush.bf16.msra.mxu0 %v1016
    %1326 = vmatpush.bf16.msra.mxu0 %v1015
    %1327 = vmatpush.bf16.msra.mxu0 %v1014
    %1328 = vmatpush.bf16.msra.mxu0 %v1013
    %1329 = vmatpush.bf16.msra.mxu0 %v1012
    %1330 = vmatmul.bf16.gmra.mxu0 %v93
    %v1331 = vpop.f32.mrf.mxu0
    %v1332 = vadd.f32 %v1318, %v1331
    %v1333 = vpop.f32.mrf.mxu0
    %v1334 = vadd.f32 %v1320, %v1333
    %1335 = vdwg.mxu0
    %1336 = vmatpush.bf16.msra.mxu0 %v1027
    %1337 = vmatpush.bf16.msra.mxu0 %v1026
    %1338 = vmatpush.bf16.msra.mxu0 %v1025
    %1339 = vmatpush.bf16.msra.mxu0 %v1024
    %1340 = vmatpush.bf16.msra.mxu0 %v1023
    %1341 = vmatpush.bf16.msra.mxu0 %v1022
    %1342 = vmatpush.bf16.msra.mxu0 %v1021
    %1343 = vmatpush.bf16.msra.mxu0 %v1020
    %1344 = vmatmul.bf16.gmra.mxu0 %v94
    %v1345 = vpop.f32.mrf.mxu0
    %v1346 = vadd.f32 %v1332, %v1345
    %v1347 = vpop.f32.mrf.mxu0
    %v1348 = vadd.f32 %v1334, %v1347
    %1349 = vdwg.mxu0
    %1350 = vmatpush.bf16.msra.mxu0 %v1035
    %1351 = vmatpush.bf16.msra.mxu0 %v1034
    %1352 = vmatpush.bf16.msra.mxu0 %v1033
    %1353 = vmatpush.bf16.msra.mxu0 %v1032
    %1354 = vmatpush.bf16.msra.mxu0 %v1031
    %1355 = vmatpush.bf16.msra.mxu0 %v1030
    %1356 = vmatpush.bf16.msra.mxu0 %v1029
    %1357 = vmatpush.bf16.msra.mxu0 %v1028
    %1358 = vmatmul.bf16.gmra.mxu0 %v95
    %v1359 = vpop.f32.mrf.mxu0
    %v1360 = vadd.f32 %v1346, %v1359
    %v1361 = vpop.f32.mrf.mxu0
    %v1362 = vadd.f32 %v1348, %v1361
    %1363 = vdwg.mxu0
    %1364 = vmatpush.bf16.msra.mxu0 %v1043
    %1365 = vmatpush.bf16.msra.mxu0 %v1042
    %1366 = vmatpush.bf16.msra.mxu0 %v1041
    %1367 = vmatpush.bf16.msra.mxu0 %v1040
    %1368 = vmatpush.bf16.msra.mxu0 %v1039
    %1369 = vmatpush.bf16.msra.mxu0 %v1038
    %1370 = vmatpush.bf16.msra.mxu0 %v1037
    %1371 = vmatpush.bf16.msra.mxu0 %v1036
    %1372 = vmatmul.bf16.gmra.mxu0 %v96
    %v1373 = vpop.f32.mrf.mxu0
    %v1374 = vadd.f32 %v1360, %v1373
    %v1375 = vpop.f32.mrf.mxu0
    %v1376 = vadd.f32 %v1362, %v1375
    %1377 = vdwg.mxu0
    %1378 = vmatpush.bf16.msra.mxu0 %v1051
    %1379 = vmatpush.bf16.msra.mxu0 %v1050
    %1380 = vmatpush.bf16.msra.mxu0 %v1049
    %1381 = vmatpush.bf16.msra.mxu0 %v1048
    %1382 = vmatpush.bf16.msra.mxu0 %v1047
    %1383 = vmatpush.bf16.msra.mxu0 %v1046
    %1384 = vmatpush.bf16.msra.mxu0 %v1045
    %1385 = vmatpush.bf16.msra.mxu0 %v1044
    %1386 = vmatmul.bf16.gmra.mxu0 %v97
    %v1387 = vpop.f32.mrf.mxu0
    %v1388 = vadd.f32 %v1374, %v1387
    %v1389 = vpop.f32.mrf.mxu0
    %v1390 = vadd.f32 %v1376, %v1389
    %1391 = vdwg.mxu0
    %1392 = vmatpush.bf16.msra.mxu0 %v1059
    %1393 = vmatpush.bf16.msra.mxu0 %v1058
    %1394 = vmatpush.bf16.msra.mxu0 %v1057
    %1395 = vmatpush.bf16.msra.mxu0 %v1056
    %1396 = vmatpush.bf16.msra.mxu0 %v1055
    %1397 = vmatpush.bf16.msra.mxu0 %v1054
    %1398 = vmatpush.bf16.msra.mxu0 %v1053
    %1399 = vmatpush.bf16.msra.mxu0 %v1052
    %1400 = vmatmul.bf16.gmra.mxu0 %v98
    %v1401 = vpop.f32.mrf.mxu0
    %v1402 = vadd.f32 %v1388, %v1401
    %v1403 = vpop.f32.mrf.mxu0
    %v1404 = vadd.f32 %v1390, %v1403
    %1405 = vdwg.mxu0
    %1406 = vmatpush.bf16.msra.mxu0 %v1067
    %1407 = vmatpush.bf16.msra.mxu0 %v1066
    %1408 = vmatpush.bf16.msra.mxu0 %v1065
    %1409 = vmatpush.bf16.msra.mxu0 %v1064
    %1410 = vmatpush.bf16.msra.mxu0 %v1063
    %1411 = vmatpush.bf16.msra.mxu0 %v1062
    %1412 = vmatpush.bf16.msra.mxu0 %v1061
    %1413 = vmatpush.bf16.msra.mxu0 %v1060
    %1414 = vmatmul.bf16.gmra.mxu0 %v99
    %v1415 = vpop.f32.mrf.mxu0
    %v1416 = vadd.f32 %v1402, %v1415
    %v1417 = vpop.f32.mrf.mxu0
    %v1418 = vadd.f32 %v1404, %v1417
    %1419 = vdwg.mxu0
    %1420 = vmatpush.bf16.msra.mxu0 %v1075
    %1421 = vmatpush.bf16.msra.mxu0 %v1074
    %1422 = vmatpush.bf16.msra.mxu0 %v1073
    %1423 = vmatpush.bf16.msra.mxu0 %v1072
    %1424 = vmatpush.bf16.msra.mxu0 %v1071
    %1425 = vmatpush.bf16.msra.mxu0 %v1070
    %1426 = vmatpush.bf16.msra.mxu0 %v1069
    %1427 = vmatpush.bf16.msra.mxu0 %v1068
    %1428 = vmatmul.bf16.gmra.mxu0 %v100
    %v1429 = vpop.f32.mrf.mxu0
    %v1430 = vadd.f32 %v1416, %v1429
    %v1431 = vpop.f32.mrf.mxu0
    %v1432 = vadd.f32 %v1418, %v1431
    %1433 = vdwg.mxu0
    %1434 = vmatpush.bf16.msra.mxu0 %v1083
    %1435 = vmatpush.bf16.msra.mxu0 %v1082
    %1436 = vmatpush.bf16.msra.mxu0 %v1081
    %1437 = vmatpush.bf16.msra.mxu0 %v1080
    %1438 = vmatpush.bf16.msra.mxu0 %v1079
    %1439 = vmatpush.bf16.msra.mxu0 %v1078
    %1440 = vmatpush.bf16.msra.mxu0 %v1077
    %1441 = vmatpush.bf16.msra.mxu0 %v1076
    %1442 = vmatmul.bf16.gmra.mxu0 %v101
    %v1443 = vpop.f32.mrf.mxu0
    %v1444 = vadd.f32 %v1430, %v1443
    %v1445 = vpop.f32.mrf.mxu0
    %v1446 = vadd.f32 %v1432, %v1445
    %1447 = vdwg.mxu0
    %1448 = vmatpush.bf16.msra.mxu0 %v1091
    %1449 = vmatpush.bf16.msra.mxu0 %v1090
    %1450 = vmatpush.bf16.msra.mxu0 %v1089
    %1451 = vmatpush.bf16.msra.mxu0 %v1088
    %1452 = vmatpush.bf16.msra.mxu0 %v1087
    %1453 = vmatpush.bf16.msra.mxu0 %v1086
    %1454 = vmatpush.bf16.msra.mxu0 %v1085
    %1455 = vmatpush.bf16.msra.mxu0 %v1084
    %1456 = vmatmul.bf16.gmra.mxu0 %v102
    %v1457 = vpop.f32.mrf.mxu0
    %v1458 = vadd.f32 %v1444, %v1457
    %v1459 = vpop.f32.mrf.mxu0
    %v1460 = vadd.f32 %v1446, %v1459
    %1461 = vdwg.mxu0
    %1462 = vmatpush.bf16.msra.mxu0 %v1099
    %1463 = vmatpush.bf16.msra.mxu0 %v1098
    %1464 = vmatpush.bf16.msra.mxu0 %v1097
    %1465 = vmatpush.bf16.msra.mxu0 %v1096
    %1466 = vmatpush.bf16.msra.mxu0 %v1095
    %1467 = vmatpush.bf16.msra.mxu0 %v1094
    %1468 = vmatpush.bf16.msra.mxu0 %v1093
    %1469 = vmatpush.bf16.msra.mxu0 %v1092
    %1470 = vmatmul.bf16.gmra.mxu0 %v103
    %v1471 = vpop.f32.mrf.mxu0
    %v1472 = vadd.f32 %v1458, %v1471
    %v1473 = vpop.f32.mrf.mxu0
    %v1474 = vadd.f32 %v1460, %v1473
    %1475 = vdwg.mxu0
    %1476 = vmatpush.bf16.msra.mxu0 %v1107
    %1477 = vmatpush.bf16.msra.mxu0 %v1106
    %1478 = vmatpush.bf16.msra.mxu0 %v1105
    %1479 = vmatpush.bf16.msra.mxu0 %v1104
    %1480 = vmatpush.bf16.msra.mxu0 %v1103
    %1481 = vmatpush.bf16.msra.mxu0 %v1102
    %1482 = vmatpush.bf16.msra.mxu0 %v1101
    %1483 = vmatpush.bf16.msra.mxu0 %v1100
    %1484 = vmatmul.bf16.gmra.mxu0 %v104
    %v1485 = vpop.f32.mrf.mxu0
    %v1486 = vadd.f32 %v1472, %v1485
    %v1487 = vpop.f32.mrf.mxu0
    %v1488 = vadd.f32 %v1474, %v1487
    %1489 = vdwg.mxu0
    %1490 = vmatpush.bf16.msra.mxu0 %v1115
    %1491 = vmatpush.bf16.msra.mxu0 %v1114
    %1492 = vmatpush.bf16.msra.mxu0 %v1113
    %1493 = vmatpush.bf16.msra.mxu0 %v1112
    %1494 = vmatpush.bf16.msra.mxu0 %v1111
    %1495 = vmatpush.bf16.msra.mxu0 %v1110
    %1496 = vmatpush.bf16.msra.mxu0 %v1109
    %1497 = vmatpush.bf16.msra.mxu0 %v1108
    %1498 = vmatmul.bf16.gmra.mxu0 %v105
    %v1499 = vpop.f32.mrf.mxu0
    %v1500 = vadd.f32 %v1486, %v1499
    %v1501 = vpop.f32.mrf.mxu0
    %v1502 = vadd.f32 %v1488, %v1501
    %1503 = vdwg.mxu0
    %1504 = vmatpush.bf16.msra.mxu0 %v1123
    %1505 = vmatpush.bf16.msra.mxu0 %v1122
    %1506 = vmatpush.bf16.msra.mxu0 %v1121
    %1507 = vmatpush.bf16.msra.mxu0 %v1120
    %1508 = vmatpush.bf16.msra.mxu0 %v1119
    %1509 = vmatpush.bf16.msra.mxu0 %v1118
    %1510 = vmatpush.bf16.msra.mxu0 %v1117
    %1511 = vmatpush.bf16.msra.mxu0 %v1116
    %1512 = vmatmul.bf16.gmra.mxu0 %v106
    %v1513 = vpop.f32.mrf.mxu0
    %v1514 = vadd.f32 %v1500, %v1513
    %v1515 = vpop.f32.mrf.mxu0
    %v1516 = vadd.f32 %v1502, %v1515
    %1517 = vdwg.mxu0
    %1518 = vmatpush.bf16.msra.mxu0 %v1131
    %1519 = vmatpush.bf16.msra.mxu0 %v1130
    %1520 = vmatpush.bf16.msra.mxu0 %v1129
    %1521 = vmatpush.bf16.msra.mxu0 %v1128
    %1522 = vmatpush.bf16.msra.mxu0 %v1127
    %1523 = vmatpush.bf16.msra.mxu0 %v1126
    %1524 = vmatpush.bf16.msra.mxu0 %v1125
    %1525 = vmatpush.bf16.msra.mxu0 %v1124
    %1526 = vmatmul.bf16.gmra.mxu0 %v107
    %v1527 = vpop.f32.mrf.mxu0
    %v1528 = vadd.f32 %v1514, %v1527
    %v1529 = vpop.f32.mrf.mxu0
    %v1530 = vadd.f32 %v1516, %v1529
    %1531 = vdwg.mxu0
    %1532 = vmatpush.bf16.msra.mxu0 %v1139
    %1533 = vmatpush.bf16.msra.mxu0 %v1138
    %1534 = vmatpush.bf16.msra.mxu0 %v1137
    %1535 = vmatpush.bf16.msra.mxu0 %v1136
    %1536 = vmatpush.bf16.msra.mxu0 %v1135
    %1537 = vmatpush.bf16.msra.mxu0 %v1134
    %1538 = vmatpush.bf16.msra.mxu0 %v1133
    %1539 = vmatpush.bf16.msra.mxu0 %v1132
    %1540 = vmatmul.bf16.gmra.mxu0 %v108
    %v1541 = vpop.f32.mrf.mxu0
    %v1542 = vadd.f32 %v1528, %v1541
    %v1543 = vpop.f32.mrf.mxu0
    %v1544 = vadd.f32 %v1530, %v1543
    %1545 = vdwg.mxu0
    %1546 = vmatpush.bf16.msra.mxu0 0
    %1547 = vmatpush.bf16.msra.mxu0 0
    %1548 = vmatpush.bf16.msra.mxu0 0
    %1549 = vmatpush.bf16.msra.mxu0 0
    %1550 = vmatpush.bf16.msra.mxu0 0
    %1551 = vmatpush.bf16.msra.mxu0 %v1142
    %1552 = vmatpush.bf16.msra.mxu0 %v1141
    %1553 = vmatpush.bf16.msra.mxu0 %v1140
    %1554 = vmatmul.bf16.gmra.mxu0 %v1292
    %v1555 = vpop.f32.mrf.mxu0
    %v1556 = vadd.f32 %v1542, %v1555
    %v1557 = vpop.f32.mrf.mxu0
    %v1558 = vadd.f32 %v1544, %v1557
    %1559 = vdwg.mxu0
    %v1560 = vmax.f32 %v1556, 0.0
    %v1561 = vmax.f32 %v1558, 0.0
    %v1562 = vld [vmem:[%s3] sm:$0xff]
    %v1563 = vld [vmem:[%s3 + $0x8] sm:$0xff]
    %v1564 = vld [vmem:[%s3 + $0x10] sm:$0xff]
    %v1565 = vld [vmem:[%s3 + $0x18] sm:$0xff]
    %v1566 = vld [vmem:[%s3 + $0x20] sm:$0xff]
    %v1567 = vld [vmem:[%s3 + $0x28] sm:$0xff]
    %v1568 = vld [vmem:[%s3 + $0x30] sm:$0xff]
    %v1569 = vld [vmem:[%s3 + $0x38] sm:$0xff]
    %v1570 = vld [vmem:[%s3 + $0x40] sm:$0xff]
    %v1571 = vld [vmem:[%s3 + $0x48] sm:$0xff]
    %v1572 = vld [vmem:[%s3 + $0x50] sm:$0xff]
    %v1573 = vld [vmem:[%s3 + $0x58] sm:$0xff]
    %v1574 = vld [vmem:[%s3 + $0x60] sm:$0xff]
    %v1575 = vld [vmem:[%s3 + $0x68] sm:$0xff]
    %v1576 = vld [vmem:[%s3 + $0x70] sm:$0xff]
    %v1577 = vld [vmem:[%s3 + $0x78] sm:$0xff]
    %v1578 = vld [vmem:[%s4] sm:$0x1]
    %v1580 = vperm.slane %v1578, 0
    %1582 = vmatpush.msra.mxu0 %v1577
    %1583 = vmatpush.msra.mxu0 %v1576
    %1584 = vmatpush.msra.mxu0 %v1575
    %1585 = vmatpush.msra.mxu0 %v1574
    %1586 = vmatpush.msra.mxu0 %v1573
    %1587 = vmatpush.msra.mxu0 %v1572
    %1588 = vmatpush.msra.mxu0 %v1571
    %1589 = vmatpush.msra.mxu0 %v1570
    %1590 = vmatpush.msra.mxu0 %v1569
    %1591 = vmatpush.msra.mxu0 %v1568
    %1592 = vmatpush.msra.mxu0 %v1567
    %1593 = vmatpush.msra.mxu0 %v1566
    %1594 = vmatpush.msra.mxu0 %v1565
    %1595 = vmatpush.msra.mxu0 %v1564
    %1596 = vmatpush.msra.mxu0 %v1563
    %1597 = vmatpush.msra.mxu0 %v1562
    %1598 = vmatmul.f32.gmra.mxu0 %v1560
    %v1599 = vpop.f32.mrf.mxu0
    %v1600 = vadd.f32 %v1580, %v1599
    %1601 = vmatmul.f32.gmra.mxu0 %v1561
    %v1602 = vpop.f32.mrf.mxu0
    %v1603 = vadd.f32 %v1580, %v1602
    %1604 = vdwg.mxu0
    %vm1605 = vcmask 15360
    %v1606 = vsel %vm1605, %v1600, -inf
    %1607 = vmax.xlane.f32.xlu0 %v1606
    %v1608 = vpop.xlane.xlu0 %1607
    %v1609 = vsel %vm1605, %v1603, -inf
    %1610 = vmax.xlane.f32.xlu0 %v1609
    %v1611 = vpop.xlane.xlu0 %1610
    %v1612 = vsub.f32 %v1600, %v1608
    %v1613 = vsub.f32 %v1603, %v1611
    %v1614 = vmul.f32 %v1612, 1.442695
    %v1615 = vpow.pop %v1614
    %v1616 = vmul.f32 %v1613, 1.442695
    %v1617 = vpow.pop %v1616
    %v1618 = vsel %vm1605, %v1615, 0.0
    %1619 = vadd.xlane.f32.xlu0 %v1618
    %v1620 = vpop.xlane.xlu0 %1619
    %v1621 = vsel %vm1605, %v1617, 0.0
    %1622 = vadd.xlane.f32.xlu0 %v1621
    %v1623 = vpop.xlane.xlu0 %1622
    %v1624 = vrcp.pop %v1620
    %v1625 = vrcp.pop %v1623
    %v1626 = vmul.f32 %v1615, %v1624
    %v1627 = vmul.f32 %v1617, %v1625
    %1628 = vst.msk [vmem:[%s5] sm:$0xff] %vm1605, %v1600
    %1629 = vst.msk [vmem:[%s5 + $0x8] sm:$0xff] %vm1605, %v1603
    %1632 = vrot.lane.b32.xlu0 %v1626, 2
    %v1633 = vpop.permute.xlu0 %1632
    %1634 = vrot.lane.b32.xlu0 %v1627, 2
    %v1635 = vpop.permute.xlu0 %1634
    %vm1638 = vcmask 31760
    %1639 = vst.msk [vmem:[%s5] sm:$0xff] %vm1638, %v1633
    %1640 = vst.msk [vmem:[%s5 + $0x8] sm:$0xff] %vm1638, %v1635
    // Predicated region
    $region30: #{tpu_custom_call.1} parent=1 // pred_check
      _
    $region31: #{tpu_custom_call.1} parent=1 // pred_check_branch
      %1642 = sbr.rel (0) target = $region33
    $region32: #{tpu_custom_call.1} parent=1 // pred_region
      _
    $region33: #{tpu_custom_call.1} parent=1 // pred_fallthru
      _
    // Predicated region
    $region34: #{tpu_custom_call.1} parent=1 // pred_check
      _
    $region35: #{tpu_custom_call.1} parent=1 // pred_check_branch
      %1644 = sbr.rel (0) target = $region37
    $region36: #{tpu_custom_call.1} parent=1 // pred_region
      _
    $region37: #{tpu_custom_call.1} parent=1 // pred_fallthru
      _
    %1645 = vsyncpa [#allocation3], 1
    %1646 = vsyncpa [#allocation5], 1

</llo_original>
